<compile_context>
chip_gen: v7x
topology: tpu7x:2x2x1
jax: 0.10.0
libtpu: 0.0.40
codegen_flags: <defaults>
</compile_context>

<pallas_src>
import functools

import jax
import jax.numpy as jnp
from jax import lax
from jax.experimental import pallas as pl
from jax.experimental.pallas import tpu as pltpu

TEMPERATURE = 1.0   # module hard-codes temperature = 1
EPS = 1e-7

_LANE = 128
_VMEM_BUDGET_BYTES = 40 * 1024 * 1024   # working-set budget (fits v7x 64 MiB VMEM)
_VMEM_LIMIT_BYTES = 48 * 1024 * 1024    # scoped limit requested from the compiler
_F32_LIVE_TEMPS = 6                     # conservative live (C, TB) f32 temporaries
_SINGLE_TILE_B_LIMIT = 1024             # above this, never emit a 1-tile grid
_MIN_TILES_LARGE_B = 4                  # pipeline depth / dual-TC sharding


def _default_tile_batch(batch: int, num_classes: int, itemsize: int) -> int:
    """Batch tile size.

    Cost model per batch row: 2 inputs x 2 pipeline buffers in the raw input
    dtype plus ~_F32_LIVE_TEMPS live f32 (C, TB) intermediates inside the
    kernel body.  The largest multiple-of-128 TB under _VMEM_BUDGET_BYTES is
    used; large batches are split into at least _MIN_TILES_LARGE_B tiles so the
    DMA pipeline has depth and the parallel grid axis can shard across cores.
    """
    bytes_per_row = num_classes * (4 * itemsize + 4 * _F32_LIVE_TEMPS)
    cap = max(_LANE, (_VMEM_BUDGET_BYTES // bytes_per_row) // _LANE * _LANE)
    if batch <= cap and batch <= _SINGLE_TILE_B_LIMIT:
        return batch          # tiny problem: single full-dim tile is legal & fine
    tb = pl.cdiv(pl.cdiv(batch, _MIN_TILES_LARGE_B), _LANE) * _LANE
    return min(cap, max(_LANE, tb))


def _kl_tile_kernel(pred_ref, label_ref, out_ref, *, batch, tile_batch,
                    inv_temp, lanes_are_batch):
    """One (TB, C) tile of logits -> per-sample KL contributions."""
    i = pl.program_id(0)

    pred = pred_ref[...].astype(jnp.float32)     # (TB, C), upcast once (bf16 ok)
    label = label_ref[...].astype(jnp.float32)
    if inv_temp != 1.0:                          # folded away at T == 1
        pred = pred * inv_temp
        label = label * inv_temp

    if lanes_are_batch:
        # C < 128: transpose the VMEM tile (XLU) so the batch axis is lane-dense
        # for the EUP/VPU-heavy math; class axis reduces over sublanes.
        pred = jnp.transpose(pred)               # (C, TB)
        label = jnp.transpose(label)
        red_axis = 0
    else:
        # C >= 128: class axis is already lane-dense; reduce over lanes.
        red_axis = 1

    partial = (batch % tile_batch) != 0          # static (Python) condition
    if partial:
        # Neutralize out-of-range batch positions *before* exp so pad garbage
        # can't produce NaN/Inf.  (Traced for every tile when B % TB != 0; the
        # iota + where are cheap VALU filler.)
        if lanes_are_batch:
            pos = i * tile_batch + lax.broadcasted_iota(
                jnp.int32, (1, tile_batch), 1)   # (1, TB)
        else:
            pos = i * tile_batch + lax.broadcasted_iota(
                jnp.int32, (tile_batch, 1), 0)   # (TB, 1)
        valid = pos < batch
        pred = jnp.where(valid, pred, 0.0)
        label = jnp.where(valid, label, 0.0)

    # log_softmax(pred) over classes.
    p_shift = pred - jnp.max(pred, axis=red_axis, keepdims=True)
    p_lse = jnp.log(jnp.sum(jnp.exp(p_shift), axis=red_axis, keepdims=True))
    log_predict = p_shift - p_lse

    # target = softmax(label) + eps, and its exact log (matches torch:
    # (softmax + 1e-7).log()).  Per-sample reciprocal + VALU broadcast-multiply
    # instead of an elementwise divide.
    l_shift = label - jnp.max(label, axis=red_axis, keepdims=True)
    l_exp = jnp.exp(l_shift)
    l_sum = jnp.sum(l_exp, axis=red_axis, keepdims=True)
    target = l_exp * (1.0 / l_sum) + EPS
    log_target = jnp.log(target)

    per_sample = jnp.sum(target * (log_target - log_predict),
                         axis=red_axis, keepdims=True)
    if partial:
        per_sample = jnp.where(valid, per_sample, 0.0)
    out_ref[...] = per_sample


def kl_loss(pred: jax.Array, label: jax.Array, *, tile_batch=None) -> jax.Array:
    """Pallas TPU implementation of KLLoss.forward(pred, label).

    pred, label: [B, C] logits (f32 or bf16). Returns a scalar float32 loss.
    """
    assert pred.shape == label.shape and pred.ndim == 2
    B, C = pred.shape
    itemsize = jnp.dtype(pred.dtype).itemsize

    lanes_are_batch = C < _LANE   # small class counts: compute in (C, TB) layout

    if tile_batch is None:
        tb = _default_tile_batch(B, C, itemsize)
    else:
        tb = B if tile_batch >= B else tile_batch
        assert tb == B or tb % _LANE == 0, "tile_batch must be a multiple of 128"
    nt = pl.cdiv(B, tb)

    est_bytes = tb * C * (4 * itemsize + 4 * _F32_LIVE_TEMPS)
    if est_bytes > _VMEM_BUDGET_BYTES:
        # TODO(synk): add a class-axis (online-softmax) tiling path for
        # vocab-scale C; the class axis is currently untiled.
        raise NotImplementedError(
            f"num_classes={C} too large for an untiled class axis "
            f"(estimated VMEM working set {est_bytes} bytes > "
            f"{_VMEM_BUDGET_BYTES}).")

    kernel = functools.partial(
        _kl_tile_kernel, batch=B, tile_batch=tb,
        inv_temp=1.0 / TEMPERATURE, lanes_are_batch=lanes_are_batch)

    if lanes_are_batch:
        # Lane-dense (1, TB) per-sample output blocks.
        out_shape = jax.ShapeDtypeStruct((1, B), jnp.float32)
        out_spec = pl.BlockSpec((1, tb), lambda i: (0, i))
    else:
        # (TB, 1) per-sample output blocks; narrow stores, but output traffic
        # (B * 4 bytes) is negligible next to the 2*B*C*itemsize input reads.
        out_shape = jax.ShapeDtypeStruct((B, 1), jnp.float32)
        out_spec = pl.BlockSpec((tb, 1), lambda i: (i, 0))

    per_sample = pl.pallas_call(
        kernel,
        out_shape=out_shape,
        grid_spec=pltpu.PrefetchScalarGridSpec(
            num_scalar_prefetch=0,
            grid=(nt,),
            in_specs=[
                pl.BlockSpec((tb, C), lambda i: (i, 0)),   # natural [B, C] blocks
                pl.BlockSpec((tb, C), lambda i: (i, 0)),
            ],
            out_specs=out_spec,
        ),
        compiler_params=pltpu.CompilerParams(
            dimension_semantics=("parallel",),        # tiles independent -> dual-TC
            vmem_limit_bytes=_VMEM_LIMIT_BYTES,
        ),
        cost_estimate=pl.CostEstimate(
            flops=12 * B * C,
            transcendentals=3 * B * C + 2 * B,
            bytes_accessed=2 * B * C * itemsize + B * 4,
        ),
    )(pred, label)

    # Tiny final reduction + global-batch mean (uses global B, not tile size).
    loss = jnp.sum(per_sample) / B
    if TEMPERATURE != 1.0:
        loss = loss * (TEMPERATURE * TEMPERATURE)
    return loss


def _kl_loss_ref(pred, label):
    # Pure-JAX reference mirroring the PyTorch forward exactly (eps inside log).
    predict = jax.nn.log_softmax(pred / TEMPERATURE, axis=1)
    target = jax.nn.softmax(label / TEMPERATURE, axis=1) + EPS
    per_sample = jnp.sum(target * (jnp.log(target) - predict), axis=1)
    return (TEMPERATURE * TEMPERATURE) * jnp.sum(per_sample) / pred.shape[0]


if __name__ == "__main__":
    key = jax.random.PRNGKey(0)
    ks = jax.random.split(key, 8)

    def check(pred, label, name, **kw):
        loss = kl_loss(pred, label, **kw)
        jax.block_until_ready(loss)
        ref = _kl_loss_ref(pred.astype(jnp.float32), label.astype(jnp.float32))
        assert jnp.allclose(loss, ref, rtol=1e-5, atol=1e-5), (name, loss, ref)

    # Case 1: small logits (batch=8, num_classes=32) — C<128 path, single tile.
    check(jax.random.normal(ks[0], (8, 32), dtype=jnp.float32),
          jax.random.normal(ks[1], (8, 32), dtype=jnp.float32), "small")

    # Case 2: multi-tile with partial last tile (B=300, TB=128), C<128 path.
    check(jax.random.normal(ks[2], (300, 10), dtype=jnp.float32),
          jax.random.normal(ks[3], (300, 10), dtype=jnp.float32), "partial",
          tile_batch=128)

    # Case 3: lane-dense class axis (C=128) — no in-kernel transpose path.
    check(jax.random.normal(ks[4], (16, 128), dtype=jnp.float32),
          jax.random.normal(ks[5], (16, 128), dtype=jnp.float32), "wide")

    # Case 4: bf16 inputs, multi-tile (exercises in-kernel upcast path).
    check(jax.random.normal(ks[6], (256, 32), dtype=jnp.float32).astype(jnp.bfloat16),
          jax.random.normal(ks[7], (256, 32), dtype=jnp.float32).astype(jnp.bfloat16),
          "bf16", tile_batch=128)

    print("KERNEL_OK")
</pallas_src>

<mosaic_0001>
module attributes {stable_mosaic.version = 11 : i64} {
  func.func @_kl_tile_kernel(%arg0: i32, %arg1: memref<8x32xf32, #tpu.memory_space<vmem>>, %arg2: memref<8x32xf32, #tpu.memory_space<vmem>>, %arg3: memref<1x8xf32, #tpu.memory_space<vmem>>) attributes {dimension_semantics = [#tpu.dimension_semantics<parallel>], iteration_bounds = array<i64: 1>, scalar_prefetch = 0 : i64, scratch_operands = 0 : i64, tpu.core_type = #tpu.core_type<tc>, window_params = [{transform_indices = @transform_0, window_bounds = array<i64: 8, 32>}, {transform_indices = @transform_1, window_bounds = array<i64: 8, 32>}, {transform_indices = @transform_2, window_bounds = array<i64: 1, 8>}]} {
    %c0 = arith.constant 0 : index
    %c0_0 = arith.constant 0 : index
    %0 = vector.load %arg1[%c0, %c0_0] : memref<8x32xf32, #tpu.memory_space<vmem>>, vector<8x32xf32>
    %c0_1 = arith.constant 0 : index
    %c0_2 = arith.constant 0 : index
    %1 = vector.load %arg2[%c0_1, %c0_2] : memref<8x32xf32, #tpu.memory_space<vmem>>, vector<8x32xf32>
    %2 = tpu.transpose %0, [1, 0] : vector<8x32xf32> -> vector<32x8xf32>
    %3 = tpu.transpose %1, [1, 0] : vector<8x32xf32> -> vector<32x8xf32>
    %cst = arith.constant dense<0xFF800000> : vector<8xf32>
    %4 = vector.multi_reduction <maximumf>, %2, %cst [0] : vector<32x8xf32> to vector<8xf32>
    %5 = vector.shape_cast %4 : vector<8xf32> to vector<1x8xf32>
    %6 = vector.broadcast %5 : vector<1x8xf32> to vector<32x8xf32>
    %7 = arith.subf %2, %6 : vector<32x8xf32>
    %8 = math.exp %7 : vector<32x8xf32>
    %cst_3 = arith.constant dense<0.000000e+00> : vector<8xf32>
    %9 = vector.multi_reduction <add>, %8, %cst_3 [0] : vector<32x8xf32> to vector<8xf32>
    %10 = vector.shape_cast %9 : vector<8xf32> to vector<1x8xf32>
    %11 = math.log %10 : vector<1x8xf32>
    %12 = vector.broadcast %11 : vector<1x8xf32> to vector<32x8xf32>
    %13 = arith.subf %7, %12 : vector<32x8xf32>
    %cst_4 = arith.constant dense<0xFF800000> : vector<8xf32>
    %14 = vector.multi_reduction <maximumf>, %3, %cst_4 [0] : vector<32x8xf32> to vector<8xf32>
    %15 = vector.shape_cast %14 : vector<8xf32> to vector<1x8xf32>
    %16 = vector.broadcast %15 : vector<1x8xf32> to vector<32x8xf32>
    %17 = arith.subf %3, %16 : vector<32x8xf32>
    %18 = math.exp %17 : vector<32x8xf32>
    %cst_5 = arith.constant dense<0.000000e+00> : vector<8xf32>
    %19 = vector.multi_reduction <add>, %18, %cst_5 [0] : vector<32x8xf32> to vector<8xf32>
    %20 = vector.shape_cast %19 : vector<8xf32> to vector<1x8xf32>
    %cst_6 = arith.constant 1.000000e+00 : f32
    %21 = vector.broadcast %cst_6 : f32 to vector<1x8xf32>
    %22 = arith.divf %21, %20 : vector<1x8xf32>
    %23 = vector.broadcast %22 : vector<1x8xf32> to vector<32x8xf32>
    %24 = arith.mulf %18, %23 : vector<32x8xf32>
    %cst_7 = arith.constant 1.000000e-07 : f32
    %25 = vector.broadcast %cst_7 : f32 to vector<32x8xf32>
    %26 = arith.addf %24, %25 : vector<32x8xf32>
    %27 = math.log %26 : vector<32x8xf32>
    %28 = arith.subf %27, %13 : vector<32x8xf32>
    %29 = arith.mulf %26, %28 : vector<32x8xf32>
    %cst_8 = arith.constant dense<0.000000e+00> : vector<8xf32>
    %30 = vector.multi_reduction <add>, %29, %cst_8 [0] : vector<32x8xf32> to vector<8xf32>
    %31 = vector.shape_cast %30 : vector<8xf32> to vector<1x8xf32>
    %c0_9 = arith.constant 0 : index
    %c0_10 = arith.constant 0 : index
    %32 = vector.load %arg3[%c0_9, %c0_10] : memref<1x8xf32, #tpu.memory_space<vmem>>, vector<1x8xf32>
    tpu.vector_store %arg3[%c0_9, %c0_10], %31 {strides = array<i32>} : memref<1x8xf32, #tpu.memory_space<vmem>>, vector<1x8xf32>,
    return
  }
  func.func @transform_0(%arg0: i32) -> (i32, i32) {
    %c0_i32 = arith.constant 0 : i32
    %c0_i32_0 = arith.constant 0 : i32
    return %arg0, %c0_i32 : i32, i32
  }
  func.func @transform_1(%arg0: i32) -> (i32, i32) {
    %c0_i32 = arith.constant 0 : i32
    %c0_i32_0 = arith.constant 0 : i32
    return %arg0, %c0_i32 : i32, i32
  }
  func.func @transform_2(%arg0: i32) -> (i32, i32) {
    %c0_i32 = arith.constant 0 : i32
    %c0_i32_0 = arith.constant 0 : i32
    return %c0_i32, %arg0 : i32, i32
  }
}

</mosaic_0001>

<llo_original>
// kernel: tpu_custom_call.1
$region0: #{tpu_custom_call.1}
  #allocation0 [shape = 'u32[]', space=smem, size = 0x4, offset = 0x4, fixed_abs, tag = 'smem constant byte address 0x4 - core index']
  #allocation1 [shape = 'u32[144,128]{1,0:T(1,128)}', space=vmem, size = 0x12000, scoped, tag = 'internal scratch']
  %s0 = inlined_call_operand.hbm [shape: f32[8,32], index: 0, kind: input, shape index: {}]
  %s1 = inlined_call_operand.hbm [shape: f32[8,32], index: 1, kind: input, shape index: {}]
  %s2 = inlined_call_operand.hbm [shape: f32[1,8], index: 2, kind: output, shape index: {}]
  %s3 = sld [smem:[#allocation0]]
  $region26: #{tpu_custom_call.1} parent=0
    _
  %s5 = ssub.s32 1, %s3
  %s6 = scalar_select 0, %s5, %s3
  $region1: #{tpu_custom_call.1} parent=0
    #allocation2 [shape = 'u8[4096]{0}', space=vmem, size = 0x1000, scoped, tag = 'input window, operand 0, single buffered']
    #allocation3 [shape = 's32[1]{0}', space=sflag, size = 0x4, scoped, tag = 'scoped memory for tpu_custom_call.1']
    #allocation4 [shape = 's32[1]{0}', space=sflag, size = 0x4, scoped, tag = 'scoped memory for tpu_custom_call.1']
    #allocation5 [shape = 'u8[4096]{0}', space=vmem, size = 0x1000, scoped, tag = 'input window, operand 1, single buffered']
    #allocation6 [shape = 's32[1]{0}', space=sflag, size = 0x4, scoped, tag = 'scoped memory for tpu_custom_call.1']
    #allocation7 [shape = 'u8[512]{0}', space=vmem, size = 0x400, scoped, tag = 'output window, operand 0, single buffered']
    %7 = vsyncpa [#allocation3], 0
    %8 = vsyncpa [#allocation6], 0
    %9 = vsyncpa [#allocation4], 0
    // Predicated region
    $region2: #{tpu_custom_call.1} parent=1 // pred_check
      _
    $region3: #{tpu_custom_call.1} parent=1 // pred_check_branch
      %11 = sbr.rel (0) target = $region5
    $region4: #{tpu_custom_call.1} parent=1 // pred_region
      %s13 = ssub.s32 128, 128
      %14 = vsyncadd [#allocation3], %s13
      %s16 = sshll.u32 [#allocation2], 4
      %s17 = int_to_ptr.vmem [resolvable:$true] %s16
      %19 = dma.hbm_to_vmem [thread:$0]  %s0, 128, %s17, [#allocation3]
    $region5: #{tpu_custom_call.1} parent=1 // pred_fallthru
      _
    // Predicated region
    $region6: #{tpu_custom_call.1} parent=1 // pred_check
      _
    $region7: #{tpu_custom_call.1} parent=1 // pred_check_branch
      %21 = sbr.rel (0) target = $region9
    $region8: #{tpu_custom_call.1} parent=1 // pred_region
      %s23 = ssub.s32 128, 128
      %24 = vsyncadd [#allocation6], %s23
      %s26 = sshll.u32 [#allocation5], 4
      %s27 = int_to_ptr.vmem [resolvable:$true] %s26
      %29 = dma.hbm_to_vmem [thread:$0]  %s1, 128, %s27, [#allocation6]
    $region9: #{tpu_custom_call.1} parent=1 // pred_fallthru
      _
    // Predicated region
    $region10: #{tpu_custom_call.1} parent=1 // pred_check
      _
    $region11: #{tpu_custom_call.1} parent=1 // pred_check_branch
      %31 = sbr.rel (0) target = $region13
    $region12: #{tpu_custom_call.1} parent=1 // pred_region
      %32 = dma.done [#allocation3], 128
    $region13: #{tpu_custom_call.1} parent=1 // pred_fallthru
      _
    // Predicated region
    $region14: #{tpu_custom_call.1} parent=1 // pred_check
      _
    $region15: #{tpu_custom_call.1} parent=1 // pred_check_branch
      %34 = sbr.rel (0) target = $region17
    $region16: #{tpu_custom_call.1} parent=1 // pred_region
      %35 = dma.done [#allocation6], 128
    $region17: #{tpu_custom_call.1} parent=1 // pred_fallthru
      _
    %v36 = vld [vmem:[#allocation2] sm:$0xff]
    %v37 = vld [vmem:[#allocation5] sm:$0xff]
    %38 = vxpose.xlu0.b32.start [1/16] %v36, 128
    %39 = vxpose.xlu0.b32.cont [2/16] 0.0, 128
    %40 = vxpose.xlu0.b32.cont [3/16] 0.0, 128
    %41 = vxpose.xlu0.b32.cont [4/16] 0.0, 128
    %42 = vxpose.xlu0.b32.cont [5/16] 0.0, 128
    %43 = vxpose.xlu0.b32.cont [6/16] 0.0, 128
    %44 = vxpose.xlu0.b32.cont [7/16] 0.0, 128
    %45 = vxpose.xlu0.b32.cont [8/16] 0.0, 128
    %46 = vxpose.xlu0.b32.cont [9/16] 0.0, 128
    %47 = vxpose.xlu0.b32.cont [10/16] 0.0, 128
    %48 = vxpose.xlu0.b32.cont [11/16] 0.0, 128
    %49 = vxpose.xlu0.b32.cont [12/16] 0.0, 128
    %50 = vxpose.xlu0.b32.cont [13/16] 0.0, 128
    %51 = vxpose.xlu0.b32.cont [14/16] 0.0, 128
    %52 = vxpose.xlu0.b32.cont [15/16] 0.0, 128
    %53 = vxpose.xlu0.b32.end [16/16] 0.0, 128
    %v54 = vpop.trf.xlu0
    %v55 = vpop.trf.xlu0
    %v56 = vpop.trf.xlu0
    %v57 = vpop.trf.xlu0
    %v58 = vpop.trf.xlu0
    %v59 = vpop.trf.xlu0
    %v60 = vpop.trf.xlu0
    %v61 = vpop.trf.xlu0
    %v62 = vpop.trf.xlu0
    %v63 = vpop.trf.xlu0
    %v64 = vpop.trf.xlu0
    %v65 = vpop.trf.xlu0
    %v66 = vpop.trf.xlu0
    %v67 = vpop.trf.xlu0
    %v68 = vpop.trf.xlu0
    %v69 = vpop.trf.xlu0
    %70 = vxpose.xlu0.b32.start [1/16] %v37, 128
    %71 = vxpose.xlu0.b32.cont [2/16] 0.0, 128
    %72 = vxpose.xlu0.b32.cont [3/16] 0.0, 128
    %73 = vxpose.xlu0.b32.cont [4/16] 0.0, 128
    %74 = vxpose.xlu0.b32.cont [5/16] 0.0, 128
    %75 = vxpose.xlu0.b32.cont [6/16] 0.0, 128
    %76 = vxpose.xlu0.b32.cont [7/16] 0.0, 128
    %77 = vxpose.xlu0.b32.cont [8/16] 0.0, 128
    %78 = vxpose.xlu0.b32.cont [9/16] 0.0, 128
    %79 = vxpose.xlu0.b32.cont [10/16] 0.0, 128
    %80 = vxpose.xlu0.b32.cont [11/16] 0.0, 128
    %81 = vxpose.xlu0.b32.cont [12/16] 0.0, 128
    %82 = vxpose.xlu0.b32.cont [13/16] 0.0, 128
    %83 = vxpose.xlu0.b32.cont [14/16] 0.0, 128
    %84 = vxpose.xlu0.b32.cont [15/16] 0.0, 128
    %85 = vxpose.xlu0.b32.end [16/16] 0.0, 128
    %v86 = vpop.trf.xlu0
    %v87 = vpop.trf.xlu0
    %v88 = vpop.trf.xlu0
    %v89 = vpop.trf.xlu0
    %v90 = vpop.trf.xlu0
    %v91 = vpop.trf.xlu0
    %v92 = vpop.trf.xlu0
    %v93 = vpop.trf.xlu0
    %v94 = vpop.trf.xlu0
    %v95 = vpop.trf.xlu0
    %v96 = vpop.trf.xlu0
    %v97 = vpop.trf.xlu0
    %v98 = vpop.trf.xlu0
    %v99 = vpop.trf.xlu0
    %v100 = vpop.trf.xlu0
    %v101 = vpop.trf.xlu0
    %vm102 = vcmask 64512
    %v103 = vsel %vm102, %v54, -inf
    %v104 = vsel %vm102, %v55, -inf
    %v105 = vsel %vm102, %v56, -inf
    %v106 = vsel %vm102, %v57, -inf
    %v107 = vmax.f32 %v103, %v104
    %v108 = vmax.f32 %v105, %v106
    %v109 = vmax.f32 %v107, %v108
    %v110 = vrot.slane %v109, 4
    %v111 = vmax.f32 %v109, %v110
    %v112 = vrot.slane %v111, 2
    %v113 = vmax.f32 %v111, %v112
    %v114 = vrot.slane %v113, 1
    %v115 = vmax.f32 %v113, %v114
    %v116 = vsub.f32 %v54, %v115
    %v117 = vsub.f32 %v55, %v115
    %v118 = vsub.f32 %v56, %v115
    %v119 = vsub.f32 %v57, %v115
    %v120 = vmul.f32 %v116, 1.442695
    %v121 = vpow.pop %v120
    %v122 = vmul.f32 %v117, 1.442695
    %v123 = vpow.pop %v122
    %v124 = vmul.f32 %v118, 1.442695
    %v125 = vpow.pop %v124
    %v126 = vmul.f32 %v119, 1.442695
    %v127 = vpow.pop %v126
    %v128 = vsel %vm102, %v121, 0.0
    %v129 = vsel %vm102, %v123, 0.0
    %v130 = vadd.f32 %v128, %v129
    %v131 = vsel %vm102, %v125, 0.0
    %v132 = vadd.f32 %v130, %v131
    %v133 = vsel %vm102, %v127, 0.0
    %v134 = vadd.f32 %v132, %v133
    %v135 = vrot.slane %v134, 4
    %v136 = vadd.f32 %v134, %v135
    %v137 = vrot.slane %v136, 2
    %v138 = vadd.f32 %v136, %v137
    %v139 = vrot.slane %v138, 1
    %v140 = vadd.f32 %v138, %v139
    %v141 = vlog2.pop %v140
    %v142 = vmul.f32 %v141, 0.6931472
    %v143 = vsub.f32 %v116, %v142
    %v144 = vsub.f32 %v117, %v142
    %v145 = vsub.f32 %v118, %v142
    %v146 = vsub.f32 %v119, %v142
    %v147 = vsel %vm102, %v86, -inf
    %v148 = vsel %vm102, %v87, -inf
    %v149 = vsel %vm102, %v88, -inf
    %v150 = vsel %vm102, %v89, -inf
    %v151 = vmax.f32 %v147, %v148
    %v152 = vmax.f32 %v149, %v150
    %v153 = vmax.f32 %v151, %v152
    %v154 = vrot.slane %v153, 4
    %v155 = vmax.f32 %v153, %v154
    %v156 = vrot.slane %v155, 2
    %v157 = vmax.f32 %v155, %v156
    %v158 = vrot.slane %v157, 1
    %v159 = vmax.f32 %v157, %v158
    %v160 = vsub.f32 %v86, %v159
    %v161 = vsub.f32 %v87, %v159
    %v162 = vsub.f32 %v88, %v159
    %v163 = vsub.f32 %v89, %v159
    %v164 = vmul.f32 %v160, 1.442695
    %v165 = vpow.pop %v164
    %v166 = vmul.f32 %v161, 1.442695
    %v167 = vpow.pop %v166
    %v168 = vmul.f32 %v162, 1.442695
    %v169 = vpow.pop %v168
    %v170 = vmul.f32 %v163, 1.442695
    %v171 = vpow.pop %v170
    %v172 = vsel %vm102, %v165, 0.0
    %v173 = vsel %vm102, %v167, 0.0
    %v174 = vadd.f32 %v172, %v173
    %v175 = vsel %vm102, %v169, 0.0
    %v176 = vadd.f32 %v174, %v175
    %v177 = vsel %vm102, %v171, 0.0
    %v178 = vadd.f32 %v176, %v177
    %v179 = vrot.slane %v178, 4
    %v180 = vadd.f32 %v178, %v179
    %v181 = vrot.slane %v180, 2
    %v182 = vadd.f32 %v180, %v181
    %v183 = vrot.slane %v182, 1
    %v184 = vadd.f32 %v182, %v183
    %v185 = vrcp.pop %v184
    %v186 = vmul.f32 1.0, %v185
    %v187 = vmul.f32 %v165, %v186
    %v188 = vmul.f32 %v167, %v186
    %v189 = vmul.f32 %v169, %v186
    %v190 = vmul.f32 %v171, %v186
    %v191 = vadd.f32 %v187, 1e-07
    %v192 = vadd.f32 %v188, 1e-07
    %v193 = vadd.f32 %v189, 1e-07
    %v194 = vadd.f32 %v190, 1e-07
    %v195 = vlog2.pop %v191
    %v196 = vmul.f32 %v195, 0.6931472
    %v197 = vlog2.pop %v192
    %v198 = vmul.f32 %v197, 0.6931472
    %v199 = vlog2.pop %v193
    %v200 = vmul.f32 %v199, 0.6931472
    %v201 = vlog2.pop %v194
    %v202 = vmul.f32 %v201, 0.6931472
    %v203 = vsub.f32 %v196, %v143
    %v204 = vsub.f32 %v198, %v144
    %v205 = vsub.f32 %v200, %v145
    %v206 = vsub.f32 %v202, %v146
    %v207 = vmul.f32 %v191, %v203
    %v208 = vmul.f32 %v192, %v204
    %v209 = vmul.f32 %v193, %v205
    %v210 = vmul.f32 %v194, %v206
    %v211 = vsel %vm102, %v207, 0.0
    %v212 = vsel %vm102, %v208, 0.0
    %v213 = vadd.f32 %v211, %v212
    %v214 = vsel %vm102, %v209, 0.0
    %v215 = vadd.f32 %v213, %v214
    %v216 = vsel %vm102, %v210, 0.0
    %v217 = vadd.f32 %v215, %v216
    %v218 = vrot.slane %v217, 4
    %v219 = vadd.f32 %v217, %v218
    %v220 = vrot.slane %v219, 2
    %v221 = vadd.f32 %v219, %v220
    %v222 = vrot.slane %v221, 1
    %v223 = vadd.f32 %v221, %v222
    %vm224 = vcmask 57344
    %225 = vst.msk [vmem:[#allocation7] sm:$0x1] %vm224, %v223
    // Predicated region
    $region18: #{tpu_custom_call.1} parent=1 // pred_check
      _
    $region19: #{tpu_custom_call.1} parent=1 // pred_check_branch
      %227 = sbr.rel (0) target = $region21
    $region20: #{tpu_custom_call.1} parent=1 // pred_region
      %s229 = ssub.s32 16, 16
      %230 = vsyncadd [#allocation4], %s229
      %s232 = sshll.u32 [#allocation7], 4
      %s233 = int_to_ptr.vmem [resolvable:$true] %s232
      %235 = dma.vmem_to_hbm [thread:$0]  %s233, 16, %s2, [#allocation4]
    $region21: #{tpu_custom_call.1} parent=1 // pred_fallthru
      _
    // Predicated region
    $region22: #{tpu_custom_call.1} parent=1 // pred_check
      _
    $region23: #{tpu_custom_call.1} parent=1 // pred_check_branch
      %237 = sbr.rel (0) target = $region25
    $region24: #{tpu_custom_call.1} parent=1 // pred_region
      %238 = dma.done [#allocation4], 16
    $region25: #{tpu_custom_call.1} parent=1 // pred_fallthru
      _
    %239 = vsyncpa [#allocation3], 1
    %240 = vsyncpa [#allocation6], 1
    %241 = vsyncpa [#allocation4], 1

</llo_original>
